<compile_context>
chip_gen: v7x
topology: tpu7x:2x2x1
jax: 0.10.0
libtpu: 0.0.40
codegen_flags: <defaults>
</compile_context>

<pallas_src>
import jax
import jax.numpy as jnp
from jax.experimental import pallas as pl
from jax.experimental.pallas import tpu as pltpu

_LANE = 128
_SUBLANE_BF16 = 16


def _gcn_kernel(adj_ref, sup_ref, selfsup_ref, b_ref, out_ref):
    """One grid step computes one [tile_m, pad] slab of the output.

    adj_ref     : [tile_m, R*N] bf16  fused relation adjacency rows (the only true stream)
    sup_ref     : [R*N, pad]    bf16  grid-invariant vstack_r(fea @ W_r)  (hoisted matmul #1)
    selfsup_ref : [tile_m, pad] f32   selfweight * (fea[k:] @ W_self) rows for this tile
    b_ref       : [1, pad]      f32   sum_r b_r + b_self
    out_ref     : [tile_m, pad] f32
    """
    out = jnp.dot(adj_ref[...], sup_ref[...], preferred_element_type=jnp.float32)
    out_ref[...] = out + selfsup_ref[...] + b_ref[...]


def _build_fused_operands(fea, adj_stack, w_rel, b_rel, w_self, b_self,
                          *, k, selfweight):
    """Wrapper-side restructuring (plain XLA ops, executed once, outside the grid)."""
    n, d = fea.shape
    num_rel = adj_stack.shape[0]
    m = n - k
    out_dim = w_self.shape[-1]
    pad = ((out_dim + _LANE - 1) // _LANE) * _LANE   # lane-dense output width

    fea_b = fea.astype(jnp.bfloat16)

    # Hoisted matmul #1: stacked per-relation support  [R*N, pad]  (bf16 MXU operand).
    sup = jnp.einsum('nd,rdo->rno', fea_b, w_rel.astype(jnp.bfloat16),
                     preferred_element_type=jnp.float32)           # [R, N, out_dim] f32
    sup = jnp.pad(sup, ((0, 0), (0, 0), (0, pad - out_dim)))
    sup_b = sup.reshape(num_rel * n, pad).astype(jnp.bfloat16)

    # Fused relation adjacency [M, R*N] = [A_1 | ... | A_R]  (no identity self-block).
    adj_comb = jnp.transpose(adj_stack, (1, 0, 2)).reshape(m, num_rel * n)
    adj_comb = adj_comb.astype(jnp.bfloat16)

    # Self term as an epilogue input: selfweight * fea[k:] @ W_self, f32, lane-padded.
    selfsup = selfweight * jnp.dot(fea_b[k:], w_self.astype(jnp.bfloat16),
                                   preferred_element_type=jnp.float32)   # [M, out_dim]
    selfsup = jnp.pad(selfsup, ((0, 0), (0, pad - out_dim)))

    # Sum of all biases, padded -> [1, pad]; stays f32 for the epilogue add.
    b_total = jnp.pad(jnp.sum(b_rel, axis=0) + b_self, ((0, 0), (0, pad - out_dim)))
    return adj_comb, sup_b, selfsup, b_total.astype(jnp.float32), pad


def _choose_tile_m(m, adj_cols, vmem_budget_bytes=16 << 20):
    """Largest bf16-sublane-aligned row tile whose double-buffered adjacency stream
    fits the budget; then shrink so the row grid has >= 2 steps when possible
    (keeps both v7x TensorCores busy and enables software pipelining)."""
    tile = _SUBLANE_BF16
    for t in (512, 256, 128, 64, 32, 16):
        if 2 * t * adj_cols * 2 <= vmem_budget_bytes:   # 2 buffers x bf16 bytes
            tile = t
            break
    while tile > _SUBLANE_BF16 and pl.cdiv(m, tile) < 2:
        tile //= 2
    return max(tile, _SUBLANE_BF16)


def single_layer_image_gcn(fea, adj_stack, w_rel, b_rel, w_self, b_self,
                           *, k, selfweight=1.0):
    n, d = fea.shape
    num_rel, m, n2 = adj_stack.shape
    assert n2 == n and m == n - k
    out_dim = w_self.shape[-1]

    adj_comb, sup_b, selfsup, b_total, pad = _build_fused_operands(
        fea, adj_stack, w_rel, b_rel, w_self, b_self, k=k, selfweight=selfweight)

    adj_cols = num_rel * n
    tile_m = _choose_tile_m(m, adj_cols)
    grid_m = max(pl.cdiv(m, tile_m), 2)        # >= 2 steps: megacore + pipelining
    m_pad = grid_m * tile_m
    if m_pad != m:                             # zero-pad the streamed row inputs
        adj_comb = jnp.pad(adj_comb, ((0, m_pad - m), (0, 0)))
        selfsup = jnp.pad(selfsup, ((0, m_pad - m), (0, 0)))

    # Explicit VMEM budget: double-buffered streamed tiles + resident support/bias.
    vmem_bytes = (2 * tile_m * adj_cols * 2      # adjacency tiles (bf16)
                  + 2 * tile_m * pad * 4         # self-support tiles (f32)
                  + 2 * tile_m * pad * 4         # output tiles (f32)
                  + 2 * adj_cols * pad * 2       # stacked support (bf16, invariant)
                  + 2 * pad * 4)                 # bias (invariant)
    vmem_limit = int(min(48 << 20, max(32 << 20, vmem_bytes + (8 << 20))))

    out_padded = pl.pallas_call(
        _gcn_kernel,
        out_shape=jax.ShapeDtypeStruct((m_pad, pad), jnp.float32),
        grid_spec=pltpu.PrefetchScalarGridSpec(
            num_scalar_prefetch=0,
            grid=(grid_m,),
            in_specs=[
                pl.BlockSpec((tile_m, adj_cols), lambda i: (i, 0)),   # adjacency rows (stream)
                pl.BlockSpec((adj_cols, pad), lambda i: (0, 0)),      # stacked support (invariant)
                pl.BlockSpec((tile_m, pad), lambda i: (i, 0)),        # self-support rows
                pl.BlockSpec((1, pad), lambda i: (0, 0)),             # fused bias (invariant)
            ],
            out_specs=pl.BlockSpec((tile_m, pad), lambda i: (i, 0)),
        ),
        compiler_params=pltpu.CompilerParams(
            # Row tiles are independent -> shard across TensorCores (v7x has 2 TCs).
            dimension_semantics=("parallel",),
            vmem_limit_bytes=vmem_limit),
    )(adj_comb, sup_b, selfsup, b_total)

    # SingleLayerImageGCN: fea2.view(-1, out_dim); drop row/lane padding first.
    return out_padded[:m, :out_dim].reshape(-1, out_dim)


def _reference_f32(fea, adj_stack, w_rel, b_rel, w_self, b_self, *, k, selfweight):
    """PyTorch-equivalent math in f32."""
    out = selfweight * (fea[k:] @ w_self) + b_self[0]
    for r in range(adj_stack.shape[0]):
        out = out + adj_stack[r] @ (fea @ w_rel[r]) + b_rel[r, 0]
    return out.reshape(-1, w_self.shape[-1])


def _reference_bf16_matched(fea, adj_stack, w_rel, b_rel, w_self, b_self,
                            *, k, selfweight):
    """Same fused operands / same bf16 casts as the kernel, in plain jnp (tight check)."""
    adj_comb, sup_b, selfsup, b_total, pad = _build_fused_operands(
        fea, adj_stack, w_rel, b_rel, w_self, b_self, k=k, selfweight=selfweight)
    out = jnp.dot(adj_comb, sup_b, preferred_element_type=jnp.float32) + selfsup + b_total
    out_dim = w_self.shape[-1]
    return out[:, :out_dim].reshape(-1, out_dim)


if __name__ == "__main__":
    # Small shapes consistent with the module (out_dim=4 is the module default).
    N, K, D, OUT_DIM = 16, 8, 256, 4
    M = N - K
    R = 2                      # e.g. relations = ["spatial", "temporal"]
    SELFWEIGHT = 1.5

    key = jax.random.PRNGKey(0)
    k_fea, k_adj, k_wr, k_br, k_ws, k_bs = jax.random.split(key, 6)

    # Post-encoder node features (stand-in for MyResNet34(images).squeeze()).
    fea = jax.random.normal(k_fea, (N, D), dtype=jnp.float32)
    adj_stack = jax.random.uniform(k_adj, (R, M, N), dtype=jnp.float32)

    # GraphConvolution parameters: uniform(-stdv, stdv), stdv = 1/sqrt(out_dim).
    stdv = 1.0 / jnp.sqrt(jnp.float32(OUT_DIM))
    w_rel = jax.random.uniform(k_wr, (R, D, OUT_DIM), jnp.float32, -stdv, stdv)
    b_rel = jax.random.uniform(k_br, (R, 1, OUT_DIM), jnp.float32, -stdv, stdv)
    w_self = jax.random.uniform(k_ws, (D, OUT_DIM), jnp.float32, -stdv, stdv)
    b_self = jax.random.uniform(k_bs, (1, OUT_DIM), jnp.float32, -stdv, stdv)

    out = single_layer_image_gcn(fea, adj_stack, w_rel, b_rel, w_self, b_self,
                                 k=K, selfweight=SELFWEIGHT)
    out = jax.block_until_ready(out)
    assert out.shape == (M, OUT_DIM), out.shape

    # Tight check: identical math (same bf16 operands) in plain jnp.
    ref_tight = _reference_bf16_matched(fea, adj_stack, w_rel, b_rel, w_self, b_self,
                                        k=K, selfweight=SELFWEIGHT)
    assert jnp.allclose(out, ref_tight, rtol=1e-3, atol=1e-3), \
        float(jnp.max(jnp.abs(out - ref_tight)))

    # Semantic check vs the f32 PyTorch-equivalent math (bf16 MXU inputs -> looser tol).
    ref = _reference_f32(fea, adj_stack, w_rel, b_rel, w_self, b_self,
                         k=K, selfweight=SELFWEIGHT)
    assert jnp.allclose(out, ref, rtol=2e-2, atol=2e-1), \
        float(jnp.max(jnp.abs(out - ref)))

    print("KERNEL_OK")
</pallas_src>

<mosaic_0001>
module attributes {stable_mosaic.version = 11 : i64} {
  func.func @_gcn_kernel(%arg0: i32, %arg1: memref<16x32xbf16, #tpu.memory_space<vmem>>, %arg2: memref<32x128xbf16, #tpu.memory_space<vmem>>, %arg3: memref<16x128xf32, #tpu.memory_space<vmem>>, %arg4: memref<1x128xf32, #tpu.memory_space<vmem>>, %arg5: memref<16x128xf32, #tpu.memory_space<vmem>>) attributes {dimension_semantics = [#tpu.dimension_semantics<parallel>], iteration_bounds = array<i64: 2>, scalar_prefetch = 0 : i64, scratch_operands = 0 : i64, tpu.core_type = #tpu.core_type<tc>, window_params = [{transform_indices = @transform_0, window_bounds = array<i64: 16, 32>}, {pipeline_mode = #tpu.pipeline_mode<synchronous>, transform_indices = @transform_1, window_bounds = array<i64: 32, 128>}, {transform_indices = @transform_2, window_bounds = array<i64: 16, 128>}, {pipeline_mode = #tpu.pipeline_mode<synchronous>, transform_indices = @transform_3, window_bounds = array<i64: 1, 128>}, {transform_indices = @transform_4, window_bounds = array<i64: 16, 128>}]} {
    %c0 = arith.constant 0 : index
    %c0_0 = arith.constant 0 : index
    %0 = vector.load %arg1[%c0, %c0_0] : memref<16x32xbf16, #tpu.memory_space<vmem>>, vector<16x32xbf16>
    %c0_1 = arith.constant 0 : index
    %c0_2 = arith.constant 0 : index
    %1 = vector.load %arg2[%c0_1, %c0_2] : memref<32x128xbf16, #tpu.memory_space<vmem>>, vector<32x128xbf16>
    %cst = arith.constant dense<0.000000e+00> : vector<16x128xf32>
    %2 = tpu.matmul %0, %1, %cst {dimension_numbers = #tpu.dot_dimension_numbers<[1], [0], [0], [1], [0, 0, 1, 1], [], []>} : vector<16x32xbf16>, vector<32x128xbf16>, vector<16x128xf32> -> vector<16x128xf32>
    %c0_3 = arith.constant 0 : index
    %c0_4 = arith.constant 0 : index
    %3 = vector.load %arg3[%c0_3, %c0_4] : memref<16x128xf32, #tpu.memory_space<vmem>>, vector<16x128xf32>
    %4 = arith.addf %2, %3 : vector<16x128xf32>
    %c0_5 = arith.constant 0 : index
    %c0_6 = arith.constant 0 : index
    %5 = vector.load %arg4[%c0_5, %c0_6] : memref<1x128xf32, #tpu.memory_space<vmem>>, vector<1x128xf32>
    %6 = vector.broadcast %5 : vector<1x128xf32> to vector<16x128xf32>
    %7 = arith.addf %4, %6 : vector<16x128xf32>
    %c0_7 = arith.constant 0 : index
    %c0_8 = arith.constant 0 : index
    %8 = vector.load %arg5[%c0_7, %c0_8] : memref<16x128xf32, #tpu.memory_space<vmem>>, vector<16x128xf32>
    tpu.vector_store %arg5[%c0_7, %c0_8], %7 {strides = array<i32>} : memref<16x128xf32, #tpu.memory_space<vmem>>, vector<16x128xf32>,
    return
  }
  func.func @transform_0(%arg0: i32) -> (i32, i32) {
    %c0_i32 = arith.constant 0 : i32
    %c0_i32_0 = arith.constant 0 : i32
    return %arg0, %c0_i32 : i32, i32
  }
  func.func @transform_1(%arg0: i32) -> (i32, i32) {
    %c0_i32 = arith.constant 0 : i32
    %c0_i32_0 = arith.constant 0 : i32
    %c0_i32_1 = arith.constant 0 : i32
    return %c0_i32, %c0_i32_0 : i32, i32
  }
  func.func @transform_2(%arg0: i32) -> (i32, i32) {
    %c0_i32 = arith.constant 0 : i32
    %c0_i32_0 = arith.constant 0 : i32
    return %arg0, %c0_i32 : i32, i32
  }
  func.func @transform_3(%arg0: i32) -> (i32, i32) {
    %c0_i32 = arith.constant 0 : i32
    %c0_i32_0 = arith.constant 0 : i32
    %c0_i32_1 = arith.constant 0 : i32
    return %c0_i32, %c0_i32_0 : i32, i32
  }
  func.func @transform_4(%arg0: i32) -> (i32, i32) {
    %c0_i32 = arith.constant 0 : i32
    %c0_i32_0 = arith.constant 0 : i32
    return %arg0, %c0_i32 : i32, i32
  }
}

</mosaic_0001>

<llo_original>
// kernel: tpu_custom_call.1
$region0: #{tpu_custom_call.1}
  #allocation0 [shape = 'u32[]', space=smem, size = 0x4, offset = 0x4, fixed_abs, tag = 'smem constant byte address 0x4 - core index']
  #allocation1 [shape = 'u32[144,128]{1,0:T(1,128)}', space=vmem, size = 0x12000, scoped, tag = 'internal scratch']
  %s0 = inlined_call_operand.hbm [shape: bf16[32,32], index: 0, kind: input, shape index: {}]
  %s1 = inlined_call_operand.hbm [shape: bf16[32,128], index: 1, kind: input, shape index: {}]
  %s2 = inlined_call_operand.hbm [shape: f32[32,128], index: 2, kind: input, shape index: {}]
  %s3 = inlined_call_operand.vmem [shape: f32[1,128], index: 3, kind: input, shape index: {}]
  %s4 = inlined_call_operand.hbm [shape: f32[32,128], index: 4, kind: output, shape index: {}]
  %s5 = sld [smem:[#allocation0]]
  $region61: #{tpu_custom_call.1} parent=0
    _
  %s7 = ssub.s32 1, %s5
  %s8 = scalar_select 0, %s7, %s5
  $region1: #{tpu_custom_call.1} parent=0
    #allocation2 [shape = 'u8[8192]{0}', space=vmem, size = 0x2000, scoped, tag = 'input window, operand 0']
    #allocation3 [shape = 's32[2]{0}', space=sflag, size = 0x8, scoped, tag = 'scoped memory for tpu_custom_call.1']
    #allocation4 [shape = 's32[2]{0}', space=sflag, size = 0x8, scoped, tag = 'scoped memory for tpu_custom_call.1']
    #allocation5 [shape = 'u8[8192]{0}', space=vmem, size = 0x2000, scoped, tag = 'input window, operand 1, single buffered']
    #allocation6 [shape = 's32[1]{0}', space=sflag, size = 0x4, scoped, tag = 'scoped memory for tpu_custom_call.1']
    #allocation7 [shape = 'u8[16384]{0}', space=vmem, size = 0x4000, scoped, tag = 'input window, operand 2']
    #allocation8 [shape = 'u8[16384]{0}', space=vmem, size = 0x4000, scoped, tag = 'output window, operand 0']
    %9 = vsyncpa [#allocation3], 0
    %s10 = scalar_lea.sflag [#allocation3], 1
    %11 = vsyncpa %s10, 0
    %12 = vsyncpa [#allocation6], 0
    %13 = vsyncpa [#allocation4], 0
    %s14 = scalar_lea.sflag [#allocation4], 1
    %15 = vsyncpa %s14, 0
    loop: start=0, step=1, limit=4
    $region2: #{tpu_custom_call.1} parent=1 // loop_pre_header
      _
    $region3: #{tpu_custom_call.1} parent=1 // loop_header
      %s17 = sphi 0, %s21
      %p18 = scmp.ge.s32.totalorder %s17, 4
      %s27 = sphi 0, %s29
      %s30 = sphi 0, %s27
      %s31 = sphi 0, %s30
      %s47 = sphi 0, %s31
      %s51 = sphi 0, %s51
      %s53 = sphi 0, %s51
      %s54 = sphi 0, %s53
      %s68 = sphi 0, %s54
      %s74 = sphi 0, %s76
      %s77 = sphi 0, %s74
      %s78 = sphi 0, %s77
      %s94 = sphi 0, %s78
      %s98 = sphi 0, %s98
      %s100 = sphi 0, %s98
      %s101 = sphi 0, %s100
      %s115 = sphi 0, %s101
      %s121 = sphi 0, %s123
      %s124 = sphi 0, %s121
      %s125 = sphi 0, %s124
      %s141 = sphi 0, %s125
    $region4: #{tpu_custom_call.1} parent=1 // loop_header_branch
      %20 = sbr.rel (%p18) target = $region8
    $region5: #{tpu_custom_call.1} parent=1 // loop_body
      %s22 = ssub.s32 %s17, 1
      %s23 = ssub.s32 %s17, 2
      %s24 = sadd.s32 %s17, 1
      %s25 = ssub.s32 %s17, %s24
      %p26 = scmp.eq.s32.totalorder %s25, 0
      %s28 = sadd.s32 %s27, 1
      %s29 = scalar_select %p26, %s27, %s28
      %p32 = pneg %p26
      %p33 = scmp.eq.s32.totalorder %s17, 1
      %p34 = por %p32, %p33
      %p35 = scmp.ne.s32.totalorder %s27, %s30
      %p36 = scmp.eq.s32.totalorder %s17, 0
      %p37 = por %p35, %p36
      %p38 = scmp.ne.s32.totalorder %s27, %s30
      %p39 = scmp.eq.s32.totalorder %s22, 1
      %p40 = por %p38, %p39
      %p41 = scmp.ne.s32.totalorder %s30, %s31
      %p42 = scmp.eq.s32.totalorder %s22, 0
      %p43 = por %p41, %p42
      %p44 = scmp.ne.s32.totalorder %s30, %s31
      %p45 = scmp.eq.s32.totalorder %s23, 1
      %p46 = por %p44, %p45
      %p48 = scmp.ne.s32.totalorder %s31, %s47
      %p49 = scmp.eq.s32.totalorder %s23, 0
      %p50 = por %p48, %p49
      %s52 = sadd.s32 %s51, 1
      %p55 = scmp.eq.s32.totalorder %s17, 1
      %p56 = scmp.ne.s32.totalorder %s51, %s53
      %p57 = scmp.eq.s32.totalorder %s17, 0
      %p58 = por %p56, %p57
      %p59 = scmp.ne.s32.totalorder %s51, %s53
      %p60 = scmp.eq.s32.totalorder %s22, 1
      %p61 = por %p59, %p60
      %p62 = scmp.ne.s32.totalorder %s53, %s54
      %p63 = scmp.eq.s32.totalorder %s22, 0
      %p64 = por %p62, %p63
      %p65 = scmp.ne.s32.totalorder %s53, %s54
      %p66 = scmp.eq.s32.totalorder %s23, 1
      %p67 = por %p65, %p66
      %p69 = scmp.ne.s32.totalorder %s54, %s68
      %p70 = scmp.eq.s32.totalorder %s23, 0
      %p71 = por %p69, %p70
      %s72 = ssub.s32 %s17, %s24
      %p73 = scmp.eq.s32.totalorder %s72, 0
      %s75 = sadd.s32 %s74, 1
      %s76 = scalar_select %p73, %s74, %s75
      %p79 = pneg %p73
      %p80 = scmp.eq.s32.totalorder %s17, 1
      %p81 = por %p79, %p80
      %p82 = scmp.ne.s32.totalorder %s74, %s77
      %p83 = scmp.eq.s32.totalorder %s17, 0
      %p84 = por %p82, %p83
      %p85 = scmp.ne.s32.totalorder %s74, %s77
      %p86 = scmp.eq.s32.totalorder %s22, 1
      %p87 = por %p85, %p86
      %p88 = scmp.ne.s32.totalorder %s77, %s78
      %p89 = scmp.eq.s32.totalorder %s22, 0
      %p90 = por %p88, %p89
      %p91 = scmp.ne.s32.totalorder %s77, %s78
      %p92 = scmp.eq.s32.totalorder %s23, 1
      %p93 = por %p91, %p92
      %p95 = scmp.ne.s32.totalorder %s78, %s94
      %p96 = scmp.eq.s32.totalorder %s23, 0
      %p97 = por %p95, %p96
      %s99 = sadd.s32 %s98, 1
      %p102 = scmp.eq.s32.totalorder %s17, 1
      %p103 = scmp.ne.s32.totalorder %s98, %s100
      %p104 = scmp.eq.s32.totalorder %s17, 0
      %p105 = por %p103, %p104
      %p106 = scmp.ne.s32.totalorder %s98, %s100
      %p107 = scmp.eq.s32.totalorder %s22, 1
      %p108 = por %p106, %p107
      %p109 = scmp.ne.s32.totalorder %s100, %s101
      %p110 = scmp.eq.s32.totalorder %s22, 0
      %p111 = por %p109, %p110
      %p112 = scmp.ne.s32.totalorder %s100, %s101
      %p113 = scmp.eq.s32.totalorder %s23, 1
      %p114 = por %p112, %p113
      %p116 = scmp.ne.s32.totalorder %s101, %s115
      %p117 = scmp.eq.s32.totalorder %s23, 0
      %p118 = por %p116, %p117
      %s119 = ssub.s32 %s17, %s24
      %p120 = scmp.eq.s32.totalorder %s119, 0
      %s122 = sadd.s32 %s121, 1
      %s123 = scalar_select %p120, %s121, %s122
      %p126 = pneg %p120
      %p127 = scmp.eq.s32.totalorder %s17, 1
      %p128 = por %p126, %p127
      %p129 = scmp.ne.s32.totalorder %s121, %s124
      %p130 = scmp.eq.s32.totalorder %s17, 0
      %p131 = por %p129, %p130
      %p132 = scmp.ne.s32.totalorder %s121, %s124
      %p133 = scmp.eq.s32.totalorder %s22, 1
      %p134 = por %p132, %p133
      %p135 = scmp.ne.s32.totalorder %s124, %s125
      %p136 = scmp.eq.s32.totalorder %s22, 0
      %p137 = por %p135, %p136
      %p138 = scmp.ne.s32.totalorder %s124, %s125
      %p139 = scmp.eq.s32.totalorder %s23, 1
      %p140 = por %p138, %p139
      %p142 = scmp.ne.s32.totalorder %s125, %s141
      %p143 = scmp.eq.s32.totalorder %s23, 0
      %p144 = por %p142, %p143
      %p145 = scmp.le.s32.totalorder 1, %s17
      %p146 = scmp.lt.s32.totalorder %s17, 3
      %p147 = pnand %p145, %p146
      %p148 = pneg %p147
      // Predicated region
      $region9: #{tpu_custom_call.1} parent=5 // pred_check
        _
      $region10: #{tpu_custom_call.1} parent=5 // pred_check_branch
        %150 = sbr.rel (%p147) target = $region12
      $region11: #{tpu_custom_call.1} parent=5 // pred_region
        %s151 = ssub.s32 %s17, 1
        // Predicated region
        $region13: #{tpu_custom_call.1} parent=11 // pred_check
          %p152 = pneg %p64
        $region14: #{tpu_custom_call.1} parent=11 // pred_check_branch
          %154 = sbr.rel (%p152) target = $region16
        $region15: #{tpu_custom_call.1} parent=11 // pred_region
          %s156 = ssub.s32 256, 256
          %157 = vsyncadd [#allocation6], %s156
          %s158 = sshll.u32 [#allocation5], 4
          %s159 = int_to_ptr.vmem [resolvable:$true] %s158
          %164 = dma.hbm_to_vmem [thread:$0]  %s1, 256, %s159, [#allocation6], 64, 64, 4
        $region16: #{tpu_custom_call.1} parent=11 // pred_fallthru
          _
        // Predicated region
        $region17: #{tpu_custom_call.1} parent=11 // pred_check
          %p165 = pneg %p111
        $region18: #{tpu_custom_call.1} parent=11 // pred_check_branch
          %167 = sbr.rel (%p165) target = $region20
        $region19: #{tpu_custom_call.1} parent=11 // pred_region
          _
        $region20: #{tpu_custom_call.1} parent=11 // pred_fallthru
          _
      $region12: #{tpu_custom_call.1} parent=5 // pred_fallthru
        _
      %p168 = scmp.lt.s32.totalorder %s17, 2
      // Predicated region
      $region21: #{tpu_custom_call.1} parent=5 // pred_check
        %p169 = pneg %p168
      $region22: #{tpu_custom_call.1} parent=5 // pred_check_branch
        %171 = sbr.rel (%p169) target = $region24
      $region23: #{tpu_custom_call.1} parent=5 // pred_region
        // Predicated region
        $region25: #{tpu_custom_call.1} parent=23 // pred_check
          %p172 = pneg %p37
        $region26: #{tpu_custom_call.1} parent=23 // pred_check_branch
          %174 = sbr.rel (%p172) target = $region28
        $region27: #{tpu_custom_call.1} parent=23 // pred_region
          %s175 = sand.u32 %s17, 1
          %s176 = scalar_lea.sflag [#allocation3], %s175
          %s177 = sand.u32 %s27, 1
          %s178 = smul.addr %s177, 8
          %s179 = scalar_lea.vmem [#allocation2], %s178
          %s180 = smul.u32 2, %s17
          %s182 = ssub.s32 128, 128
          %183 = vsyncadd %s176, %s182
          %s184 = smul.addr %s180, 64
          %s185 = scalar_lea.hbm %s0, %s184
          %s186 = sshll.u32 %s179, 4
          %s187 = int_to_ptr.vmem [resolvable:$true] %s186
          %192 = dma.hbm_to_vmem [thread:$0]  %s185, 128, %s187, %s176, 64, 64, 4
        $region28: #{tpu_custom_call.1} parent=23 // pred_fallthru
          _
        // Predicated region
        $region29: #{tpu_custom_call.1} parent=23 // pred_check
          %p193 = pneg %p84
        $region30: #{tpu_custom_call.1} parent=23 // pred_check_branch
          %195 = sbr.rel (%p193) target = $region32
        $region31: #{tpu_custom_call.1} parent=23 // pred_region
          %s196 = sand.u32 %s17, 1
          %s197 = scalar_lea.sflag [#allocation3], %s196
          %s198 = sand.u32 %s74, 1
          %s199 = smul.addr %s198, 16
          %s200 = scalar_lea.vmem [#allocation7], %s199
          %s201 = smul.u32 2, %s17
          %s203 = ssub.s32 256, 256
          %204 = vsyncadd %s197, %s203
          %s205 = smul.addr %s201, 128
          %s206 = scalar_lea.hbm %s2, %s205
          %s207 = sshll.u32 %s200, 4
          %s208 = int_to_ptr.vmem [resolvable:$true] %s207
          %213 = dma.hbm_to_vmem [thread:$0]  %s206, 256, %s208, %s197, 128, 128, 8
        $region32: #{tpu_custom_call.1} parent=23 // pred_fallthru
          _
      $region24: #{tpu_custom_call.1} parent=5 // pred_fallthru
        _
      %p214 = scmp.le.s32.totalorder 1, %s17
      %p215 = scmp.lt.s32.totalorder %s17, 3
      %p216 = pnand %p214, %p215
      %p217 = pneg %p216
      // Predicated region
      $region33: #{tpu_custom_call.1} parent=5 // pred_check
        _
      $region34: #{tpu_custom_call.1} parent=5 // pred_check_branch
        %219 = sbr.rel (%p216) target = $region36
      $region35: #{tpu_custom_call.1} parent=5 // pred_region
        %s220 = ssub.s32 %s17, 1
        %s221 = sand.u32 %s22, 1
        %s222 = scalar_lea.sflag [#allocation3], %s221
        %s223 = sand.u32 %s30, 1
        %s224 = smul.addr %s223, 8
        %s225 = scalar_lea.vmem [#allocation2], %s224
        // Predicated region
        $region37: #{tpu_custom_call.1} parent=35 // pred_check
          %p226 = pneg %p43
        $region38: #{tpu_custom_call.1} parent=35 // pred_check_branch
          %228 = sbr.rel (%p226) target = $region40
        $region39: #{tpu_custom_call.1} parent=35 // pred_region
          %229 = dma.done %s222, 128
        $region40: #{tpu_custom_call.1} parent=35 // pred_fallthru
          _
        // Predicated region
        $region41: #{tpu_custom_call.1} parent=35 // pred_check
          %p230 = pneg %p64
        $region42: #{tpu_custom_call.1} parent=35 // pred_check_branch
          %232 = sbr.rel (%p230) target = $region44
        $region43: #{tpu_custom_call.1} parent=35 // pred_region
          %233 = dma.done [#allocation6], 256
        $region44: #{tpu_custom_call.1} parent=35 // pred_fallthru
          _
        %s234 = sand.u32 %s22, 1
        %s235 = scalar_lea.sflag [#allocation3], %s234
        %s236 = sand.u32 %s77, 1
        %s237 = smul.addr %s236, 16
        %s238 = scalar_lea.vmem [#allocation7], %s237
        // Predicated region
        $region45: #{tpu_custom_call.1} parent=35 // pred_check
          %p239 = pneg %p90
        $region46: #{tpu_custom_call.1} parent=35 // pred_check_branch
          %241 = sbr.rel (%p239) target = $region48
        $region47: #{tpu_custom_call.1} parent=35 // pred_region
          %242 = dma.done %s235, 256
        $region48: #{tpu_custom_call.1} parent=35 // pred_fallthru
          _
        %s243 = sand.u32 %s22, 1
        %s244 = scalar_lea.sflag [#allocation3], %s243
        %s245 = sand.u32 %s30, 1
        %s246 = smul.addr %s245, 8
        %s247 = scalar_lea.vmem [#allocation2], %s246
        %p248 = pneg %p43
        %p249 = pneg %p40
        %p250 = pneg %p64
        %p251 = pneg %p61
        %s252 = sand.u32 %s22, 1
        %s253 = scalar_lea.sflag [#allocation3], %s252
        %s254 = sand.u32 %s77, 1
        %s255 = smul.addr %s254, 16
        %s256 = scalar_lea.vmem [#allocation7], %s255
        %p257 = pneg %p90
        %p258 = pneg %p87
        %p259 = pneg %p111
        %p260 = pneg %p108
        %p261 = pneg %p137
        %p262 = pneg %p134
        %s263 = sand.u32 %s124, 1
        %s264 = scalar_lea.sflag [#allocation4], %s263
        %s265 = sand.u32 %s124, 1
        %s266 = smul.addr %s265, 16
        %s267 = scalar_lea.vmem [#allocation8], %s266
        %s268 = smul.u32 2, %s22
        %s269 = smul.u32 2, %s22
        %s270 = smul.u32 2, %s22
        %v272 = vld [vmem:[%s225] sm:$0xf]
        %v273 = vld [vmem:[%s225 + $0x4] sm:$0xf]
        %v274 = vld [vmem:[#allocation5] sm:$0xf]
        %v275 = vld [vmem:[#allocation5 + $0x4] sm:$0xf]
        %v276 = vld [vmem:[#allocation5 + $0x8] sm:$0xf]
        %v277 = vld [vmem:[#allocation5 + $0xc] sm:$0xf]
        %v278 = vld [vmem:[%s238] sm:$0xff]
        %v279 = vld [vmem:[%s238 + $0x8] sm:$0xff]
        %v282 = vunpack.c.l.b16 %v272
        %v283 = vunpack.c.l.b16 %v273
        %v284 = vpack.c.b16 %v283, %v282
        %v289 = vunpack.c.l.b16 %v274
        %v290 = vunpack.c.l.b16 %v275
        %v291 = vunpack.c.l.b16 %v276
        %v292 = vunpack.c.l.b16 %v277
        %v293 = vpack.c.b16 %v290, %v289
        %v294 = vpack.c.b16 %v292, %v291
        %vm297 = vcmask 261120
        %v299 = vsel %vm297, %v284, 0
        %301 = vmatprep.subr.bf16.mxu0 0
        %302 = vmatpush1.bf16.msra.mxu0 %v293
        %303 = vmatprep.subr.bf16.mxu0 0
        %304 = vmatpush1.bf16.msra.mxu0 %v294
        %305 = vmatprep.subr.bf16.mxu0 0
        %306 = vmatpush1.bf16.msra.mxu0 0
        %307 = vmatprep.subr.bf16.mxu0 0
        %308 = vmatpush1.bf16.msra.mxu0 0
        %309 = vmatprep.subr.bf16.mxu0 0
        %310 = vmatpush1.bf16.msra.mxu0 0
        %311 = vmatprep.subr.bf16.mxu0 0
        %312 = vmatpush1.bf16.msra.mxu0 0
        %313 = vmatprep.subr.bf16.mxu0 0
        %314 = vmatpush1.bf16.msra.mxu0 0
        %315 = vmatprep.subr.bf16.mxu0 0
        %316 = vmatpush1.bf16.msra.mxu0 0
        %317 = vmatprep.subr.bf16.mxu0 0
        %318 = vmatpush1.bf16.msra.mxu0 0
        %319 = vmatprep.subr.bf16.mxu0 0
        %320 = vmatpush1.bf16.msra.mxu0 0
        %321 = vmatprep.subr.bf16.mxu0 0
        %322 = vmatpush1.bf16.msra.mxu0 0
        %323 = vmatprep.subr.bf16.mxu0 0
        %324 = vmatpush1.bf16.msra.mxu0 0
        %325 = vmatprep.subr.bf16.mxu0 0
        %326 = vmatpush1.bf16.msra.mxu0 0
        %327 = vmatprep.subr.bf16.mxu0 0
        %328 = vmatpush1.bf16.msra.mxu0 0
        %329 = vmatprep.subr.bf16.mxu0 0
        %330 = vmatpush1.bf16.msra.mxu0 0
        %331 = vmatprep.subr.bf16.mxu0 0
        %332 = vmatpush1.bf16.msra.mxu0 0
        %333 = vmatprep.mubr.bf16.mxu0 0
        %334 = vmatmul.mubr.bf16.gmra.mrb[0].mxu0 %v299
        %v335 = vpop.f32.mrb[0].mxu0
        %v336 = vadd.f32 %v278, %v335
        %v337 = vpop.f32.mrb[0].mxu0
        %v338 = vpop.f32.mrb[0].mxu0
        %v339 = vadd.f32 %v279, %v338
        %v340 = vpop.f32.mrb[0].mxu0
        %341 = vdwg.mxu0
        %v342 = vld [vmem:[%s3] sm:$0x1]
        %v344 = vlaneseq
        %v345 = vshrl.u32 %v344, 7
        %v346 = vsub.s32 0, %v345
        %v347 = vrot.slane %v342, %v346
        %v349 = vadd.f32 %v336, %v347
        %v350 = vadd.f32 %v339, %v347
        %351 = vst [vmem:[%s267] sm:$0xff] %v349
        %352 = vst [vmem:[%s267 + $0x8] sm:$0xff] %v350
        %s353 = sand.u32 %s124, 1
        %s354 = scalar_lea.sflag [#allocation4], %s353
        %s355 = sand.u32 %s124, 1
        %s356 = smul.addr %s355, 16
        %s357 = scalar_lea.vmem [#allocation8], %s356
        // Predicated region
        $region49: #{tpu_custom_call.1} parent=35 // pred_check
          %p358 = pneg %p134
        $region50: #{tpu_custom_call.1} parent=35 // pred_check_branch
          %360 = sbr.rel (%p358) target = $region52
        $region51: #{tpu_custom_call.1} parent=35 // pred_region
          %s361 = smul.u32 2, %s22
          %s363 = ssub.s32 256, 256
          %364 = vsyncadd %s354, %s363
          %s365 = smul.addr %s361, 128
          %s366 = scalar_lea.hbm %s4, %s365
          %s367 = sshll.u32 %s357, 4
          %s368 = int_to_ptr.vmem [resolvable:$true] %s367
          %373 = dma.vmem_to_hbm [thread:$0]  %s368, 256, %s366, %s354, 128, 128, 8
        $region52: #{tpu_custom_call.1} parent=35 // pred_fallthru
          _
      $region36: #{tpu_custom_call.1} parent=5 // pred_fallthru
        _
      %p374 = scmp.le.s32.totalorder 2, %s17
      // Predicated region
      $region53: #{tpu_custom_call.1} parent=5 // pred_check
        %p375 = pneg %p374
      $region54: #{tpu_custom_call.1} parent=5 // pred_check_branch
        %377 = sbr.rel (%p375) target = $region56
      $region55: #{tpu_custom_call.1} parent=5 // pred_region
        %s378 = ssub.s32 %s17, 2
        // Predicated region
        $region57: #{tpu_custom_call.1} parent=55 // pred_check
          %p379 = pneg %p140
        $region58: #{tpu_custom_call.1} parent=55 // pred_check_branch
          %381 = sbr.rel (%p379) target = $region60
        $region59: #{tpu_custom_call.1} parent=55 // pred_region
          %s382 = sand.u32 %s125, 1
          %s383 = scalar_lea.sflag [#allocation4], %s382
          %s384 = sand.u32 %s125, 1
          %s385 = smul.addr %s384, 16
          %s386 = scalar_lea.vmem [#allocation8], %s385
          %387 = dma.done %s383, 256
        $region60: #{tpu_custom_call.1} parent=55 // pred_fallthru
          _
      $region56: #{tpu_custom_call.1} parent=5 // pred_fallthru
        _
    $region6: #{tpu_custom_call.1} parent=1 // loop_footer
      %s21 = sadd.s32 1, %s17
    $region7: #{tpu_custom_call.1} parent=1 // loop_footer_branch
      %16 = sbr.rel target = $region3
    $region8: #{tpu_custom_call.1} parent=1 // loop_exit
      _
    %388 = vsyncpa [#allocation3], 1
    %s389 = scalar_lea.sflag [#allocation3], 1
    %390 = vsyncpa %s389, 1
    %391 = vsyncpa [#allocation6], 1
    %392 = vsyncpa [#allocation4], 1
    %s393 = scalar_lea.sflag [#allocation4], 1
    %394 = vsyncpa %s393, 1

</llo_original>
